<compile_context>
chip_gen: v6e
topology: v6e:2x2x1
jax: 0.10.0
libtpu: 0.0.40
codegen_flags: <defaults>
</compile_context>

<pallas_src>
import functools

import jax
import jax.numpy as jnp
from jax.experimental import pallas as pl
from jax.experimental.pallas import tpu as pltpu

_LANE = 128
_SUBLANE = 8


def _round_up(v, m):
    return -(-v // m) * m


# --------------------------- parameter packing --------------------------------

def _pack_params(layers):
    """Packs [(W(in,out), b(out,)), ...] into one (rows, 128) f32 slab.

    Returns (slab, meta) where meta[i] = (w_row_off, b_row_off, in_dim, out_dim);
    every row offset is a multiple of 8 (sublane aligned).
    """
    blocks, meta, off = [], [], 0
    for (w, b) in layers:
        din, dout = w.shape
        assert dout <= _LANE, "layer output dim must fit in one 128-lane slab"
        w_rows = _round_up(din, _SUBLANE)
        w_pad = jnp.zeros((w_rows, _LANE), jnp.float32).at[:din, :dout].set(w)
        b_pad = jnp.zeros((_SUBLANE, _LANE), jnp.float32).at[0, :dout].set(
            b.reshape(-1))
        meta.append((off, off + w_rows, din, dout))
        blocks.extend([w_pad, b_pad])
        off += w_rows + _SUBLANE
    return jnp.concatenate(blocks, axis=0), tuple(meta)


# ------------------------------ Pallas kernel ----------------------------------

def _gsnn_kernel(dag_meta, glob_meta, tm,
                 x_ref, summ_ref, params_ref, out_ref,
                 feat_ref, sum0_ref):
    """grid = (phase, row_tile).  phase 0 -> summary0, phase 1 -> summary1."""
    p = pl.program_id(0)
    i = pl.program_id(1)

    def mlp(s, meta):
        # Linear -> ReLU stack; weights sliced statically out of the packed slab.
        for (w_off, b_off, din, dout) in meta:
            w = params_ref[w_off:w_off + din, :dout]
            b = params_ref[b_off:b_off + 1, :dout]
            s = jnp.dot(s, w, preferred_element_type=jnp.float32) + b
            s = jnp.maximum(s, 0.0)  # act_fn := ReLU
        return s

    # Compute the per-phase node features once (first row tile of each phase).
    @pl.when(jnp.logical_and(p == 0, i == 0))
    def _():
        feat_ref[...] = mlp(x_ref[...], dag_meta)          # dag_layer stack

    @pl.when(jnp.logical_and(p == 1, i == 0))
    def _():
        feat_ref[...] = mlp(sum0_ref[...], glob_meta)      # global_layer stack

    # Graph summarization: row tile of (summ @ features).  summ streamed as
    # bf16 (exact 0/1 values), accumulated in f32 on the MXU.
    summ_tile = summ_ref[...].astype(jnp.float32)          # (tm, N)
    tile = jnp.dot(summ_tile, feat_ref[...],
                   preferred_element_type=jnp.float32)     # (tm, out_dim)
    out_ref[...] = tile

    # Keep summary level 0 resident so phase 1 can run the global MLP on it.
    @pl.when(p == 0)
    def _():
        row = pl.multiple_of(i * tm, tm)
        sum0_ref[pl.ds(row, tm), :] = tile


# ------------------------------- wrapper ---------------------------------------

def graph_snn_forward(x, summ_mats, dag_params, glob_params, output_dim, *,
                      tm=None):
    """Fused GraphSNN forward.  Returns [summary_level0, summary_level1]."""
    n, input_dim = x.shape

    params_slab, meta = _pack_params(list(dag_params) + list(glob_params))
    dag_meta = meta[:len(dag_params)]
    glob_meta = meta[len(dag_params):]

    # Pack both summarization matrices into one streamed bf16 operand.
    summ_packed = jnp.stack([summ_mats[0], summ_mats[1]], axis=0).astype(
        jnp.bfloat16)

    if tm is None:
        tm = n
        for cand in (512, 256, 128):      # row tile for the NxN matmuls
            if n % cand == 0:
                tm = cand
                break
    assert n % tm == 0, "row tile must divide node count"
    num_tiles = n // tm

    kernel = functools.partial(_gsnn_kernel, dag_meta, glob_meta, tm)

    out = pl.pallas_call(
        kernel,
        grid=(2, num_tiles),
        in_specs=[
            # resident operands: constant index map -> DMA'd once
            pl.BlockSpec((n, input_dim), lambda p, i: (0, 0)),
            # streamed row tiles of the selected summarization matrix
            pl.BlockSpec((None, tm, n), lambda p, i: (p, i, 0)),
            pl.BlockSpec(params_slab.shape, lambda p, i: (0, 0)),
        ],
        # single output slab holding both summaries
        out_specs=pl.BlockSpec((None, tm, output_dim), lambda p, i: (p, i, 0)),
        out_shape=jax.ShapeDtypeStruct((2, n, output_dim), jnp.float32),
        scratch_shapes=[
            pltpu.VMEM((n, output_dim), jnp.float32),   # current MLP features
            pltpu.VMEM((n, output_dim), jnp.float32),   # summary level 0
        ],
        compiler_params=pltpu.CompilerParams(
            # phase axis is sequential; row-tile axis carries the feat/sum0
            # scratch dependency, so keep it "arbitrary" as well.
            dimension_semantics=("arbitrary", "arbitrary")),
    )(x, summ_packed, params_slab)
    return [out[0], out[1]]


# --------------------------- parameter construction ----------------------------

def _xavier_uniform(key, fan_in, fan_out):
    # matches nn.init.xavier_uniform_ on an (out, in) weight; stored (in, out)
    bound = (6.0 / (fan_in + fan_out)) ** 0.5
    return jax.random.uniform(key, (fan_in, fan_out), jnp.float32,
                              minval=-bound, maxval=bound)


def build_layer_params(key, input_dim, hid_dims, output_dim):
    """Mirrors GraphSNN._build_layer: hid_dims Linear layers + one output Linear."""
    params = []
    dims = [input_dim] + list(hid_dims) + [output_dim]
    for i in range(len(dims) - 1):
        key, sub = jax.random.split(key)
        w = _xavier_uniform(sub, dims[i], dims[i + 1])
        b = jnp.zeros((dims[i + 1],), jnp.float32)   # nn.init.zeros_
        params.append((w, b))
    return params, key


# ----------------------------- reference (pure JAX) -----------------------------

def reference_forward(x, summ_mats, dag_params, glob_params):
    s = x
    for (w, b) in dag_params:
        s = jnp.maximum(s @ w + b, 0.0)
    s = summ_mats[0] @ s
    out0 = s
    for (w, b) in glob_params:
        s = jnp.maximum(s @ w + b, 0.0)
    s = summ_mats[1] @ s
    return [out0, s]


# ----------------------------------- main ---------------------------------------

if __name__ == "__main__":
    # shapes consistent with the module: N nodes, input_dim = 5 + 8 = 13
    N = 32
    input_dim = 13
    hid_dims = [32, 16]
    output_dim = 8

    key = jax.random.PRNGKey(0)
    dag_params, key = build_layer_params(key, input_dim, hid_dims, output_dim)
    glob_params, key = build_layer_params(key, output_dim, hid_dims, output_dim)

    key, kx, k0, k1 = jax.random.split(key, 4)
    x = jax.random.normal(kx, (N, input_dim), dtype=jnp.float32)
    # "sparse" summarization matrices: 0/1 masks stored dense (exact in bf16)
    summ0 = (jax.random.uniform(k0, (N, N)) < 0.2).astype(jnp.float32)
    summ1 = (jax.random.uniform(k1, (N, N)) < 0.2).astype(jnp.float32)
    summ_mats = [summ0, summ1]

    outs = graph_snn_forward(x, summ_mats, dag_params, glob_params, output_dim)
    outs = [jax.block_until_ready(o) for o in outs]

    refs = reference_forward(x, summ_mats, dag_params, glob_params)
    for o, r in zip(outs, refs):
        assert o.shape == r.shape and o.dtype == jnp.float32
        assert jnp.allclose(o, r, atol=1e-4, rtol=1e-4), "mismatch vs reference"

    print("KERNEL_OK")
</pallas_src>

<mosaic_0001>
module attributes {stable_mosaic.version = 11 : i64} {
  func.func @_gsnn_kernel(%arg0: i32, %arg1: i32, %arg2: memref<32x13xf32, #tpu.memory_space<vmem>>, %arg3: memref<1x32x32xbf16, #tpu.memory_space<vmem>>, %arg4: memref<168x128xf32, #tpu.memory_space<vmem>>, %arg5: memref<1x32x8xf32, #tpu.memory_space<vmem>>, %arg6: memref<32x8xf32, #tpu.memory_space<vmem>>, %arg7: memref<32x8xf32, #tpu.memory_space<vmem>>) attributes {dimension_semantics = [#tpu.dimension_semantics<arbitrary>, #tpu.dimension_semantics<arbitrary>], iteration_bounds = array<i64: 2, 1>, scalar_prefetch = 0 : i64, scratch_operands = 2 : i64, tpu.core_type = #tpu.core_type<tc>, window_params = [{pipeline_mode = #tpu.pipeline_mode<synchronous>, transform_indices = @transform_0, window_bounds = array<i64: 32, 13>}, {transform_indices = @transform_1, window_bounds = array<i64: 1, 32, 32>}, {pipeline_mode = #tpu.pipeline_mode<synchronous>, transform_indices = @transform_2, window_bounds = array<i64: 168, 128>}, {transform_indices = @transform_3, window_bounds = array<i64: 1, 32, 8>}]} {
    %c0_i32 = arith.constant 0 : i32
    %0 = arith.cmpi eq, %arg0, %c0_i32 : i32
    %c0_i32_0 = arith.constant 0 : i32
    %1 = arith.cmpi eq, %arg1, %c0_i32_0 : i32
    %2 = arith.andi %0, %1 : i1
    %3 = arith.extui %2 : i1 to i32
    %c0_i32_1 = arith.constant 0 : i32
    %4 = arith.cmpi ne, %3, %c0_i32_1 : i32
    scf.if %4 {
      %c0_13 = arith.constant 0 : index
      %c0_14 = arith.constant 0 : index
      %21 = vector.load %arg2[%c0_13, %c0_14] : memref<32x13xf32, #tpu.memory_space<vmem>>, vector<32x13xf32>
      %c0_15 = arith.constant 0 : index
      %c0_16 = arith.constant 0 : index
      %22 = vector.load %arg4[%c0_15, %c0_16] : memref<168x128xf32, #tpu.memory_space<vmem>>, vector<13x32xf32>
      %c16 = arith.constant 16 : index
      %c0_17 = arith.constant 0 : index
      %23 = vector.load %arg4[%c16, %c0_17] : memref<168x128xf32, #tpu.memory_space<vmem>>, vector<1x32xf32>
      %cst_18 = arith.constant dense<0.000000e+00> : vector<32x32xf32>
      %24 = tpu.matmul %21, %22, %cst_18 {dimension_numbers = #tpu.dot_dimension_numbers<[1], [0], [0], [1], [0, 0, 1, 1], [], []>} : vector<32x13xf32>, vector<13x32xf32>, vector<32x32xf32> -> vector<32x32xf32>
      %25 = vector.broadcast %23 : vector<1x32xf32> to vector<32x32xf32>
      %26 = arith.addf %24, %25 : vector<32x32xf32>
      %cst_19 = arith.constant 0.000000e+00 : f32
      %27 = vector.broadcast %cst_19 : f32 to vector<32x32xf32>
      %28 = arith.maximumf %26, %27 : vector<32x32xf32>
      %c24 = arith.constant 24 : index
      %c0_20 = arith.constant 0 : index
      %29 = vector.load %arg4[%c24, %c0_20] : memref<168x128xf32, #tpu.memory_space<vmem>>, vector<32x16xf32>
      %c56 = arith.constant 56 : index
      %c0_21 = arith.constant 0 : index
      %30 = vector.load %arg4[%c56, %c0_21] : memref<168x128xf32, #tpu.memory_space<vmem>>, vector<1x16xf32>
      %cst_22 = arith.constant dense<0.000000e+00> : vector<32x16xf32>
      %31 = tpu.matmul %28, %29, %cst_22 {dimension_numbers = #tpu.dot_dimension_numbers<[1], [0], [0], [1], [0, 0, 1, 1], [], []>} : vector<32x32xf32>, vector<32x16xf32>, vector<32x16xf32> -> vector<32x16xf32>
      %32 = vector.broadcast %30 : vector<1x16xf32> to vector<32x16xf32>
      %33 = arith.addf %31, %32 : vector<32x16xf32>
      %cst_23 = arith.constant 0.000000e+00 : f32
      %34 = vector.broadcast %cst_23 : f32 to vector<32x16xf32>
      %35 = arith.maximumf %33, %34 : vector<32x16xf32>
      %c64 = arith.constant 64 : index
      %c0_24 = arith.constant 0 : index
      %36 = vector.load %arg4[%c64, %c0_24] : memref<168x128xf32, #tpu.memory_space<vmem>>, vector<16x8xf32>
      %c80 = arith.constant 80 : index
      %c0_25 = arith.constant 0 : index
      %37 = vector.load %arg4[%c80, %c0_25] : memref<168x128xf32, #tpu.memory_space<vmem>>, vector<1x8xf32>
      %cst_26 = arith.constant dense<0.000000e+00> : vector<32x8xf32>
      %38 = tpu.matmul %35, %36, %cst_26 {dimension_numbers = #tpu.dot_dimension_numbers<[1], [0], [0], [1], [0, 0, 1, 1], [], []>} : vector<32x16xf32>, vector<16x8xf32>, vector<32x8xf32> -> vector<32x8xf32>
      %39 = vector.broadcast %37 : vector<1x8xf32> to vector<32x8xf32>
      %40 = arith.addf %38, %39 : vector<32x8xf32>
      %cst_27 = arith.constant 0.000000e+00 : f32
      %41 = vector.broadcast %cst_27 : f32 to vector<32x8xf32>
      %42 = arith.maximumf %40, %41 : vector<32x8xf32>
      %c0_28 = arith.constant 0 : index
      %c0_29 = arith.constant 0 : index
      %43 = vector.load %arg6[%c0_28, %c0_29] : memref<32x8xf32, #tpu.memory_space<vmem>>, vector<32x8xf32>
      tpu.vector_store %arg6[%c0_28, %c0_29], %42 {strides = array<i32>} : memref<32x8xf32, #tpu.memory_space<vmem>>, vector<32x8xf32>,
    } else {
    }
    %c1_i32 = arith.constant 1 : i32
    %5 = arith.cmpi eq, %arg0, %c1_i32 : i32
    %c0_i32_2 = arith.constant 0 : i32
    %6 = arith.cmpi eq, %arg1, %c0_i32_2 : i32
    %7 = arith.andi %5, %6 : i1
    %8 = arith.extui %7 : i1 to i32
    %c0_i32_3 = arith.constant 0 : i32
    %9 = arith.cmpi ne, %8, %c0_i32_3 : i32
    scf.if %9 {
      %c0_13 = arith.constant 0 : index
      %c0_14 = arith.constant 0 : index
      %21 = vector.load %arg7[%c0_13, %c0_14] : memref<32x8xf32, #tpu.memory_space<vmem>>, vector<32x8xf32>
      %c88 = arith.constant 88 : index
      %c0_15 = arith.constant 0 : index
      %22 = vector.load %arg4[%c88, %c0_15] : memref<168x128xf32, #tpu.memory_space<vmem>>, vector<8x32xf32>
      %c96 = arith.constant 96 : index
      %c0_16 = arith.constant 0 : index
      %23 = vector.load %arg4[%c96, %c0_16] : memref<168x128xf32, #tpu.memory_space<vmem>>, vector<1x32xf32>
      %cst_17 = arith.constant dense<0.000000e+00> : vector<32x32xf32>
      %24 = tpu.matmul %21, %22, %cst_17 {dimension_numbers = #tpu.dot_dimension_numbers<[1], [0], [0], [1], [0, 0, 1, 1], [], []>} : vector<32x8xf32>, vector<8x32xf32>, vector<32x32xf32> -> vector<32x32xf32>
      %25 = vector.broadcast %23 : vector<1x32xf32> to vector<32x32xf32>
      %26 = arith.addf %24, %25 : vector<32x32xf32>
      %cst_18 = arith.constant 0.000000e+00 : f32
      %27 = vector.broadcast %cst_18 : f32 to vector<32x32xf32>
      %28 = arith.maximumf %26, %27 : vector<32x32xf32>
      %c104 = arith.constant 104 : index
      %c0_19 = arith.constant 0 : index
      %29 = vector.load %arg4[%c104, %c0_19] : memref<168x128xf32, #tpu.memory_space<vmem>>, vector<32x16xf32>
      %c136 = arith.constant 136 : index
      %c0_20 = arith.constant 0 : index
      %30 = vector.load %arg4[%c136, %c0_20] : memref<168x128xf32, #tpu.memory_space<vmem>>, vector<1x16xf32>
      %cst_21 = arith.constant dense<0.000000e+00> : vector<32x16xf32>
      %31 = tpu.matmul %28, %29, %cst_21 {dimension_numbers = #tpu.dot_dimension_numbers<[1], [0], [0], [1], [0, 0, 1, 1], [], []>} : vector<32x32xf32>, vector<32x16xf32>, vector<32x16xf32> -> vector<32x16xf32>
      %32 = vector.broadcast %30 : vector<1x16xf32> to vector<32x16xf32>
      %33 = arith.addf %31, %32 : vector<32x16xf32>
      %cst_22 = arith.constant 0.000000e+00 : f32
      %34 = vector.broadcast %cst_22 : f32 to vector<32x16xf32>
      %35 = arith.maximumf %33, %34 : vector<32x16xf32>
      %c144 = arith.constant 144 : index
      %c0_23 = arith.constant 0 : index
      %36 = vector.load %arg4[%c144, %c0_23] : memref<168x128xf32, #tpu.memory_space<vmem>>, vector<16x8xf32>
      %c160 = arith.constant 160 : index
      %c0_24 = arith.constant 0 : index
      %37 = vector.load %arg4[%c160, %c0_24] : memref<168x128xf32, #tpu.memory_space<vmem>>, vector<1x8xf32>
      %cst_25 = arith.constant dense<0.000000e+00> : vector<32x8xf32>
      %38 = tpu.matmul %35, %36, %cst_25 {dimension_numbers = #tpu.dot_dimension_numbers<[1], [0], [0], [1], [0, 0, 1, 1], [], []>} : vector<32x16xf32>, vector<16x8xf32>, vector<32x8xf32> -> vector<32x8xf32>
      %39 = vector.broadcast %37 : vector<1x8xf32> to vector<32x8xf32>
      %40 = arith.addf %38, %39 : vector<32x8xf32>
      %cst_26 = arith.constant 0.000000e+00 : f32
      %41 = vector.broadcast %cst_26 : f32 to vector<32x8xf32>
      %42 = arith.maximumf %40, %41 : vector<32x8xf32>
      %c0_27 = arith.constant 0 : index
      %c0_28 = arith.constant 0 : index
      %43 = vector.load %arg6[%c0_27, %c0_28] : memref<32x8xf32, #tpu.memory_space<vmem>>, vector<32x8xf32>
      tpu.vector_store %arg6[%c0_27, %c0_28], %42 {strides = array<i32>} : memref<32x8xf32, #tpu.memory_space<vmem>>, vector<32x8xf32>,
    } else {
    }
    %c0 = arith.constant 0 : index
    %c0_4 = arith.constant 0 : index
    %c0_5 = arith.constant 0 : index
    %10 = vector.load %arg3[%c0, %c0_4, %c0_5] : memref<1x32x32xbf16, #tpu.memory_space<vmem>>, vector<1x32x32xbf16>
    %11 = vector.shape_cast %10 : vector<1x32x32xbf16> to vector<32x32xbf16>
    %12 = arith.extf %11 : vector<32x32xbf16> to vector<32x32xf32>
    %c0_6 = arith.constant 0 : index
    %c0_7 = arith.constant 0 : index
    %13 = vector.load %arg6[%c0_6, %c0_7] : memref<32x8xf32, #tpu.memory_space<vmem>>, vector<32x8xf32>
    %cst = arith.constant dense<0.000000e+00> : vector<32x8xf32>
    %14 = tpu.matmul %12, %13, %cst {dimension_numbers = #tpu.dot_dimension_numbers<[1], [0], [0], [1], [0, 0, 1, 1], [], []>} : vector<32x32xf32>, vector<32x8xf32>, vector<32x8xf32> -> vector<32x8xf32>
    %c0_8 = arith.constant 0 : index
    %c0_9 = arith.constant 0 : index
    %c0_10 = arith.constant 0 : index
    %15 = vector.load %arg5[%c0_8, %c0_9, %c0_10] : memref<1x32x8xf32, #tpu.memory_space<vmem>>, vector<1x32x8xf32>
    %16 = vector.shape_cast %15 : vector<1x32x8xf32> to vector<32x8xf32>
    %17 = vector.shape_cast %14 : vector<32x8xf32> to vector<1x32x8xf32>
    tpu.vector_store %arg5[%c0_8, %c0_9, %c0_10], %17 {strides = array<i32>} : memref<1x32x8xf32, #tpu.memory_space<vmem>>, vector<1x32x8xf32>,
    %c0_i32_11 = arith.constant 0 : i32
    %18 = arith.cmpi eq, %arg0, %c0_i32_11 : i32
    %19 = arith.extui %18 : i1 to i32
    %c0_i32_12 = arith.constant 0 : i32
    %20 = arith.cmpi ne, %19, %c0_i32_12 : i32
    scf.if %20 {
      %c32_i32 = arith.constant 32 : i32
      %21 = arith.muli %arg1, %c32_i32 : i32
      %22 = tpu.assume_multiple %21, 32 : i32
      %23 = arith.index_cast %22 : i32 to index
      %c0_13 = arith.constant 0 : index
      %24 = vector.load %arg7[%23, %c0_13] : memref<32x8xf32, #tpu.memory_space<vmem>>, vector<32x8xf32>
      tpu.vector_store %arg7[%23, %c0_13], %14 {strides = array<i32>} : memref<32x8xf32, #tpu.memory_space<vmem>>, vector<32x8xf32>,
    } else {
    }
    return
  }
  func.func @transform_0(%arg0: i32, %arg1: i32) -> (i32, i32) {
    %c0_i32 = arith.constant 0 : i32
    %c0_i32_0 = arith.constant 0 : i32
    %c0_i32_1 = arith.constant 0 : i32
    return %c0_i32, %c0_i32_0 : i32, i32
  }
  func.func @transform_1(%arg0: i32, %arg1: i32) -> (i32, i32, i32) {
    %c0_i32 = arith.constant 0 : i32
    %c0_i32_0 = arith.constant 0 : i32
    return %arg0, %arg1, %c0_i32 : i32, i32, i32
  }
  func.func @transform_2(%arg0: i32, %arg1: i32) -> (i32, i32) {
    %c0_i32 = arith.constant 0 : i32
    %c0_i32_0 = arith.constant 0 : i32
    %c0_i32_1 = arith.constant 0 : i32
    return %c0_i32, %c0_i32_0 : i32, i32
  }
  func.func @transform_3(%arg0: i32, %arg1: i32) -> (i32, i32, i32) {
    %c0_i32 = arith.constant 0 : i32
    %c0_i32_0 = arith.constant 0 : i32
    return %arg0, %arg1, %c0_i32 : i32, i32, i32
  }
}

</mosaic_0001>

<llo_original>
// kernel: tpu_custom_call.1
$region0: #{tpu_custom_call.1}
  #allocation0 [shape = 'u32[]', space=smem, size = 0x4, offset = 0x4, fixed_abs, tag = 'smem constant byte address 0x4 - core index']
  #allocation1 [shape = 'u32[144,128]{1,0:T(1,128)}', space=vmem, size = 0x12000, scoped, tag = 'internal scratch']
  #allocation2 [shape = 'f32[32,8]{1,0:T(8,128)}', space=vmem, size = 0x4000, scoped, tag = 'scratch operand']
  #allocation3 [shape = 'f32[32,8]{1,0:T(8,128)}', space=vmem, size = 0x4000, scoped, tag = 'scratch operand']
  %s0 = inlined_call_operand.vmem [shape: f32[32,13], index: 0, kind: input, shape index: {}]
  %s1 = inlined_call_operand.vmem [shape: bf16[2,32,32], index: 1, kind: input, shape index: {}]
  %s2 = inlined_call_operand.hbm [shape: f32[168,128], index: 2, kind: input, shape index: {}]
  %s3 = inlined_call_operand.vmem [shape: f32[2,32,8], index: 3, kind: output, shape index: {}]
  %s4 = sld [smem:[#allocation0]]
  $region61: #{tpu_custom_call.1} parent=0
    _
  %s6 = ssub.s32 1, %s4
  %s7 = scalar_select 0, %s6, %s4
  $region1: #{tpu_custom_call.1} parent=0
    #allocation4 [shape = 'u8[86016]{0}', space=vmem, size = 0x15000, scoped, tag = 'input window, operand 2, single buffered']
    #allocation5 [shape = 's32[2]{0}', space=sflag, size = 0x8, scoped, tag = 'scoped memory for tpu_custom_call.1']
    %8 = vsyncpa [#allocation5], 0
    loop: start=0, step=1, limit=4
    $region2: #{tpu_custom_call.1} parent=1 // loop_pre_header
      _
    $region3: #{tpu_custom_call.1} parent=1 // loop_header
      %s10 = sphi 0, %s14
      %p11 = scmp.ge.s32.totalorder %s10, 4
      %s17 = sphi 0, %s29
      %s18 = sphi 0, %s25
      %s19 = sphi 0, %s17
      %s20 = sphi 0, %s18
      %s21 = sphi 0, %s19
      %s22 = sphi 0, %s20
      %s30 = sphi 0, %s30
      %s32 = sphi 0, %s30
      %s33 = sphi 0, %s32
      %s47 = sphi 0, %s33
      %s55 = sphi 0, %s57
      %s58 = sphi 0, %s55
      %s59 = sphi 0, %s58
      %s75 = sphi 0, %s59
      %s79 = sphi 0, %s79
      %s81 = sphi 0, %s79
      %s82 = sphi 0, %s81
      %s96 = sphi 0, %s82
      %s104 = sphi 0, %s106
      %s107 = sphi 0, %s104
      %s108 = sphi 0, %s107
      %s124 = sphi 0, %s108
    $region4: #{tpu_custom_call.1} parent=1 // loop_header_branch
      %13 = sbr.rel (%p11) target = $region8
    $region5: #{tpu_custom_call.1} parent=1 // loop_body
      %s15 = ssub.s32 %s10, 1
      %s16 = ssub.s32 %s10, 2
      %s23 = sadd.s32 1, %s18
      %p24 = scmp.ge.s32.totalorder %s23, 1
      %s25 = scalar_select %p24, 0, %s23
      %s26 = sadd.s32 1, %s17
      %s27 = scalar_select %p24, %s26, %s17
      %p28 = scmp.ge.s32.totalorder %s27, 2
      %s29 = scalar_select %p28, 0, %s27
      %s31 = sadd.s32 %s30, 1
      %p34 = scmp.eq.s32.totalorder %s10, 1
      %p35 = scmp.ne.s32.totalorder %s30, %s32
      %p36 = scmp.eq.s32.totalorder %s10, 0
      %p37 = por %p35, %p36
      %p38 = scmp.ne.s32.totalorder %s30, %s32
      %p39 = scmp.eq.s32.totalorder %s15, 1
      %p40 = por %p38, %p39
      %p41 = scmp.ne.s32.totalorder %s32, %s33
      %p42 = scmp.eq.s32.totalorder %s15, 0
      %p43 = por %p41, %p42
      %p44 = scmp.ne.s32.totalorder %s32, %s33
      %p45 = scmp.eq.s32.totalorder %s16, 1
      %p46 = por %p44, %p45
      %p48 = scmp.ne.s32.totalorder %s33, %s47
      %p49 = scmp.eq.s32.totalorder %s16, 0
      %p50 = por %p48, %p49
      %s51 = ssub.s32 %s17, %s29
      %s52 = ssub.s32 %s18, %s25
      %s53 = sor.u32 %s51, %s52
      %p54 = scmp.eq.s32.totalorder %s53, 0
      %s56 = sadd.s32 %s55, 1
      %s57 = scalar_select %p54, %s55, %s56
      %p60 = pneg %p54
      %p61 = scmp.eq.s32.totalorder %s10, 1
      %p62 = por %p60, %p61
      %p63 = scmp.ne.s32.totalorder %s55, %s58
      %p64 = scmp.eq.s32.totalorder %s10, 0
      %p65 = por %p63, %p64
      %p66 = scmp.ne.s32.totalorder %s55, %s58
      %p67 = scmp.eq.s32.totalorder %s15, 1
      %p68 = por %p66, %p67
      %p69 = scmp.ne.s32.totalorder %s58, %s59
      %p70 = scmp.eq.s32.totalorder %s15, 0
      %p71 = por %p69, %p70
      %p72 = scmp.ne.s32.totalorder %s58, %s59
      %p73 = scmp.eq.s32.totalorder %s16, 1
      %p74 = por %p72, %p73
      %p76 = scmp.ne.s32.totalorder %s59, %s75
      %p77 = scmp.eq.s32.totalorder %s16, 0
      %p78 = por %p76, %p77
      %s80 = sadd.s32 %s79, 1
      %p83 = scmp.eq.s32.totalorder %s10, 1
      %p84 = scmp.ne.s32.totalorder %s79, %s81
      %p85 = scmp.eq.s32.totalorder %s10, 0
      %p86 = por %p84, %p85
      %p87 = scmp.ne.s32.totalorder %s79, %s81
      %p88 = scmp.eq.s32.totalorder %s15, 1
      %p89 = por %p87, %p88
      %p90 = scmp.ne.s32.totalorder %s81, %s82
      %p91 = scmp.eq.s32.totalorder %s15, 0
      %p92 = por %p90, %p91
      %p93 = scmp.ne.s32.totalorder %s81, %s82
      %p94 = scmp.eq.s32.totalorder %s16, 1
      %p95 = por %p93, %p94
      %p97 = scmp.ne.s32.totalorder %s82, %s96
      %p98 = scmp.eq.s32.totalorder %s16, 0
      %p99 = por %p97, %p98
      %s100 = ssub.s32 %s17, %s29
      %s101 = ssub.s32 %s18, %s25
      %s102 = sor.u32 %s100, %s101
      %p103 = scmp.eq.s32.totalorder %s102, 0
      %s105 = sadd.s32 %s104, 1
      %s106 = scalar_select %p103, %s104, %s105
      %p109 = pneg %p103
      %p110 = scmp.eq.s32.totalorder %s10, 1
      %p111 = por %p109, %p110
      %p112 = scmp.ne.s32.totalorder %s104, %s107
      %p113 = scmp.eq.s32.totalorder %s10, 0
      %p114 = por %p112, %p113
      %p115 = scmp.ne.s32.totalorder %s104, %s107
      %p116 = scmp.eq.s32.totalorder %s15, 1
      %p117 = por %p115, %p116
      %p118 = scmp.ne.s32.totalorder %s107, %s108
      %p119 = scmp.eq.s32.totalorder %s15, 0
      %p120 = por %p118, %p119
      %p121 = scmp.ne.s32.totalorder %s107, %s108
      %p122 = scmp.eq.s32.totalorder %s16, 1
      %p123 = por %p121, %p122
      %p125 = scmp.ne.s32.totalorder %s108, %s124
      %p126 = scmp.eq.s32.totalorder %s16, 0
      %p127 = por %p125, %p126
      %p128 = scmp.le.s32.totalorder 1, %s10
      %p129 = scmp.lt.s32.totalorder %s10, 3
      %p130 = pnand %p128, %p129
      %p131 = pneg %p130
      // Predicated region
      $region9: #{tpu_custom_call.1} parent=5 // pred_check
        _
      $region10: #{tpu_custom_call.1} parent=5 // pred_check_branch
        %133 = sbr.rel (%p130) target = $region12
      $region11: #{tpu_custom_call.1} parent=5 // pred_region
        %s134 = ssub.s32 %s10, 1
        // Predicated region
        $region13: #{tpu_custom_call.1} parent=11 // pred_check
          %p135 = pneg %p43
        $region14: #{tpu_custom_call.1} parent=11 // pred_check_branch
          %137 = sbr.rel (%p135) target = $region16
        $region15: #{tpu_custom_call.1} parent=11 // pred_region
          _
        $region16: #{tpu_custom_call.1} parent=11 // pred_fallthru
          _
        // Predicated region
        $region17: #{tpu_custom_call.1} parent=11 // pred_check
          %p138 = pneg %p92
        $region18: #{tpu_custom_call.1} parent=11 // pred_check_branch
          %140 = sbr.rel (%p138) target = $region20
        $region19: #{tpu_custom_call.1} parent=11 // pred_region
          %s142 = ssub.s32 2688, 2688
          %143 = vsyncadd [#allocation5], %s142
          %s144 = sshll.u32 [#allocation4], 4
          %s145 = int_to_ptr.vmem [resolvable:$true] %s144
          %150 = dma.hbm_to_vmem [thread:$0]  %s2, 2688, %s145, [#allocation5], 128, 128, 8
        $region20: #{tpu_custom_call.1} parent=11 // pred_fallthru
          _
      $region12: #{tpu_custom_call.1} parent=5 // pred_fallthru
        _
      %p151 = scmp.lt.s32.totalorder %s10, 2
      // Predicated region
      $region21: #{tpu_custom_call.1} parent=5 // pred_check
        %p152 = pneg %p151
      $region22: #{tpu_custom_call.1} parent=5 // pred_check_branch
        %154 = sbr.rel (%p152) target = $region24
      $region23: #{tpu_custom_call.1} parent=5 // pred_region
        // Predicated region
        $region25: #{tpu_custom_call.1} parent=23 // pred_check
          %p155 = pneg %p65
        $region26: #{tpu_custom_call.1} parent=23 // pred_check_branch
          %157 = sbr.rel (%p155) target = $region28
        $region27: #{tpu_custom_call.1} parent=23 // pred_region
          %s158 = smul.u32 4, %s18
          %p159 = scmp.lt.s32.totalorder %s17, 1
          %s160 = scalar_select %p159, %s17, 1
          %p161 = scmp.lt.s32.totalorder %s158, 3
          %s162 = scalar_select %p161, %s158, 3
          %s163 = smul.addr %s160, 4
          %s164 = sadd.s32 %s162, %s163
          %s165 = smul.addr %s164, 4
          %s166 = scalar_lea.vmem %s1, %s165
          %s167 = smul.u32 4, %s18
        $region28: #{tpu_custom_call.1} parent=23 // pred_fallthru
          _
      $region24: #{tpu_custom_call.1} parent=5 // pred_fallthru
        _
      %p168 = scmp.le.s32.totalorder 1, %s10
      %p169 = scmp.lt.s32.totalorder %s10, 3
      %p170 = pnand %p168, %p169
      %p171 = pneg %p170
      // Predicated region
      $region29: #{tpu_custom_call.1} parent=5 // pred_check
        _
      $region30: #{tpu_custom_call.1} parent=5 // pred_check_branch
        %173 = sbr.rel (%p170) target = $region32
      $region31: #{tpu_custom_call.1} parent=5 // pred_region
        %s174 = ssub.s32 %s10, 1
        // Predicated region
        $region33: #{tpu_custom_call.1} parent=31 // pred_check
          %p175 = pneg %p92
        $region34: #{tpu_custom_call.1} parent=31 // pred_check_branch
          %177 = sbr.rel (%p175) target = $region36
        $region35: #{tpu_custom_call.1} parent=31 // pred_region
          %178 = dma.done [#allocation5], 2688
        $region36: #{tpu_custom_call.1} parent=31 // pred_fallthru
          _
        %p179 = pneg %p43
        %p180 = pneg %p40
        %s181 = smul.u32 4, %s20
        %p182 = scmp.lt.s32.totalorder %s19, 1
        %s183 = scalar_select %p182, %s19, 1
        %p184 = scmp.lt.s32.totalorder %s181, 3
        %s185 = scalar_select %p184, %s181, 3
        %s186 = smul.addr %s183, 4
        %s187 = sadd.s32 %s185, %s186
        %s188 = smul.addr %s187, 4
        %s189 = scalar_lea.vmem %s1, %s188
        %p190 = pneg %p71
        %p191 = pneg %p68
        %p192 = pneg %p92
        %p193 = pneg %p89
        %p194 = pneg %p120
        %p195 = pneg %p117
        %s196 = smul.u32 4, %s20
        %p197 = scmp.lt.s32.totalorder %s19, 1
        %s198 = scalar_select %p197, %s19, 1
        %p199 = scmp.lt.s32.totalorder %s196, 3
        %s200 = scalar_select %p199, %s196, 3
        %s201 = smul.addr %s198, 4
        %s202 = sadd.s32 %s200, %s201
        %s203 = smul.addr %s202, 8
        %s204 = scalar_lea.vmem %s3, %s203
        %s205 = smul.u32 4, %s20
        %p206 = scmp.lt.s32.totalorder %s19, 1
        %s207 = scalar_select %p206, %s19, 1
        %p208 = scmp.lt.s32.totalorder %s205, 3
        %s209 = scalar_select %p208, %s205, 3
        %s210 = smul.addr %s207, 4
        %s211 = sadd.s32 %s209, %s210
        %s212 = smul.addr %s211, 4
        %s213 = scalar_lea.vmem %s1, %s212
        %s214 = smul.u32 4, %s20
        %s215 = smul.u32 4, %s20
        %p216 = scmp.lt.s32.totalorder %s19, 1
        %s217 = scalar_select %p216, %s19, 1
        %p218 = scmp.lt.s32.totalorder %s215, 3
        %s219 = scalar_select %p218, %s215, 3
        %s220 = smul.addr %s217, 4
        %s221 = sadd.s32 %s219, %s220
        %s222 = smul.addr %s221, 8
        %s223 = scalar_lea.vmem %s3, %s222
        %s224 = smul.u32 4, %s20
        %p225 = scmp.eq.s32.totalorder %s19, 0
        %p226 = scmp.eq.s32.totalorder %s20, 0
        %p227 = pnand %p225, %p226
        %p228 = pneg %p227
        // Predicated region
        $region37: #{tpu_custom_call.1} parent=31 // pred_check
          _
        $region38: #{tpu_custom_call.1} parent=31 // pred_check_branch
          %230 = sbr.rel (%p227) target = $region40
        $region39: #{tpu_custom_call.1} parent=31 // pred_region
          %v231 = vld [vmem:[%s0] sm:$0xff]
          %v232 = vld [vmem:[%s0 + $0x8] sm:$0xff]
          %v233 = vld [vmem:[%s0 + $0x10] sm:$0xff]
          %v234 = vld [vmem:[%s0 + $0x18] sm:$0xff]
          %v235 = vld [vmem:[#allocation4] sm:$0xff]
          %v236 = vld [vmem:[#allocation4 + $0x8] sm:$0x1f]
          %v237 = vld [vmem:[#allocation4 + $0x10] sm:$0x1]
          %v238 = vlaneseq
          %v239 = vshrl.u32 %v238, 7
          %v240 = vsub.s32 0, %v239
          %v241 = vrot.slane %v237, %v240
          %vm242 = vcmask 105472
          %v244 = vsel %vm242, %v231, 0
          %v247 = vsel %vm242, %v232, 0
          %v250 = vsel %vm242, %v233, 0
          %v253 = vsel %vm242, %v234, 0
          %vm255 = vcmask 1044480
          %v257 = vsel %vm255, %v236, 0
          %259 = vmatprep.subr.mxu0 0.0
          %260 = vmatpush1.msra.mxu0 0.0
          %261 = vmatprep.subr.mxu0 0.0
          %262 = vmatpush1.msra.mxu0 0.0
          %263 = vmatprep.subr.mxu0 0.0
          %264 = vmatpush1.msra.mxu0 0.0
          %265 = vmatprep.subr.mxu0 0.0
          %266 = vmatpush1.msra.mxu0 0.0
          %267 = vmatprep.subr.mxu0 0.0
          %268 = vmatpush1.msra.mxu0 0.0
          %269 = vmatprep.subr.mxu0 0.0
          %270 = vmatpush1.msra.mxu0 0.0
          %271 = vmatprep.subr.mxu0 0.0
          %272 = vmatpush1.msra.mxu0 0.0
          %273 = vmatprep.subr.mxu0 0.0
          %274 = vmatpush1.msra.mxu0 0.0
          %275 = vmatprep.subr.mxu0 0.0
          %276 = vmatpush1.msra.mxu0 0.0
          %277 = vmatprep.subr.mxu0 0.0
          %278 = vmatpush1.msra.mxu0 0.0
          %279 = vmatprep.subr.mxu0 0.0
          %280 = vmatpush1.msra.mxu0 0.0
          %281 = vmatprep.subr.mxu0 0.0
          %282 = vmatpush1.msra.mxu0 0.0
          %283 = vmatprep.subr.mxu0 0.0
          %284 = vmatpush1.msra.mxu0 0.0
          %285 = vmatprep.subr.mxu0 0.0
          %286 = vmatpush1.msra.mxu0 0.0
          %287 = vmatprep.subr.mxu0 0.0
          %288 = vmatpush1.msra.mxu0 %v257
          %289 = vmatprep.subr.mxu0 0.0
          %290 = vmatpush1.msra.mxu0 %v235
          %291 = vmatprep.subr.mxu0 0.0
          %292 = vmatpush2.msra.mxu0 0.0
          %293 = vmatprep.subr.mxu0 0.0
          %294 = vmatpush2.msra.mxu0 0.0
          %295 = vmatprep.subr.mxu0 0.0
          %296 = vmatpush2.msra.mxu0 0.0
          %297 = vmatprep.subr.mxu0 0.0
          %298 = vmatpush2.msra.mxu0 0.0
          %299 = vmatprep.subr.mxu0 0.0
          %300 = vmatpush2.msra.mxu0 0.0
          %301 = vmatprep.subr.mxu0 0.0
          %302 = vmatpush2.msra.mxu0 0.0
          %303 = vmatprep.subr.mxu0 0.0
          %304 = vmatpush2.msra.mxu0 0.0
          %305 = vmatprep.subr.mxu0 0.0
          %306 = vmatpush2.msra.mxu0 0.0
          %307 = vmatprep.subr.mxu0 0.0
          %308 = vmatpush2.msra.mxu0 0.0
          %309 = vmatprep.subr.mxu0 0.0
          %310 = vmatpush2.msra.mxu0 0.0
          %311 = vmatprep.subr.mxu0 0.0
          %312 = vmatpush2.msra.mxu0 0.0
          %313 = vmatprep.subr.mxu0 0.0
          %314 = vmatpush2.msra.mxu0 0.0
          %315 = vmatprep.subr.mxu0 0.0
          %316 = vmatpush2.msra.mxu0 0.0
          %317 = vmatprep.subr.mxu0 0.0
          %318 = vmatpush2.msra.mxu0 0.0
          %319 = vmatprep.subr.mxu0 0.0
          %320 = vmatpush2.msra.mxu0 0.0
          %321 = vmatprep.subr.mxu0 0.0
          %322 = vmatpush2.msra.mxu0 0.0
          %323 = vmatprep.mubr.f32.mxu0 0.0
          %324 = vmatmul.mubr.f32.gmra.mxu0 %v244
          %v325 = vpop.f32.mrf.mxu0
          %v326 = vadd.f32 %v241, %v325
          %v327 = vpop.f32.mrf.mxu0
          %328 = vmatprep.mubr.f32.mxu0 0.0
          %329 = vmatmul.mubr.f32.gmra.mxu0 %v247
          %v330 = vpop.f32.mrf.mxu0
          %v331 = vadd.f32 %v241, %v330
          %v332 = vpop.f32.mrf.mxu0
          %333 = vmatprep.mubr.f32.mxu0 0.0
          %334 = vmatmul.mubr.f32.gmra.mxu0 %v250
          %v335 = vpop.f32.mrf.mxu0
          %v336 = vadd.f32 %v241, %v335
          %v337 = vpop.f32.mrf.mxu0
          %338 = vmatprep.mubr.f32.mxu0 0.0
          %339 = vmatmul.mubr.f32.gmra.mxu0 %v253
          %v340 = vpop.f32.mrf.mxu0
          %v341 = vadd.f32 %v241, %v340
          %v342 = vpop.f32.mrf.mxu0
          %343 = vdwg.mxu0
          %v344 = vmax.f32 %v326, 0.0
          %v345 = vmax.f32 %v331, 0.0
          %v346 = vmax.f32 %v336, 0.0
          %v347 = vmax.f32 %v341, 0.0
          %v348 = vld [vmem:[#allocation4 + $0x18] sm:$0xff]
          %v349 = vld [vmem:[#allocation4 + $0x20] sm:$0xff]
          %v350 = vld [vmem:[#allocation4 + $0x28] sm:$0xff]
          %v351 = vld [vmem:[#allocation4 + $0x30] sm:$0xff]
          %v352 = vld [vmem:[#allocation4 + $0x38] sm:$0x1]
          %v353 = vlaneseq
          %v354 = vshrl.u32 %v353, 7
          %v355 = vsub.s32 0, %v354
          %v356 = vrot.slane %v352, %v355
          %vm357 = vcmask 261120
          %v359 = vsel %vm357, %v344, 0
          %v362 = vsel %vm357, %v345, 0
          %v365 = vsel %vm357, %v346, 0
          %v368 = vsel %vm357, %v347, 0
          %370 = vmatprep.subr.mxu0 0.0
          %371 = vmatpush1.msra.mxu0 0.0
          %372 = vmatprep.subr.mxu0 0.0
          %373 = vmatpush1.msra.mxu0 0.0
          %374 = vmatprep.subr.mxu0 0.0
          %375 = vmatpush1.msra.mxu0 0.0
          %376 = vmatprep.subr.mxu0 0.0
          %377 = vmatpush1.msra.mxu0 0.0
          %378 = vmatprep.subr.mxu0 0.0
          %379 = vmatpush1.msra.mxu0 0.0
          %380 = vmatprep.subr.mxu0 0.0
          %381 = vmatpush1.msra.mxu0 0.0
          %382 = vmatprep.subr.mxu0 0.0
          %383 = vmatpush1.msra.mxu0 0.0
          %384 = vmatprep.subr.mxu0 0.0
          %385 = vmatpush1.msra.mxu0 0.0
          %386 = vmatprep.subr.mxu0 0.0
          %387 = vmatpush1.msra.mxu0 0.0
          %388 = vmatprep.subr.mxu0 0.0
          %389 = vmatpush1.msra.mxu0 0.0
          %390 = vmatprep.subr.mxu0 0.0
          %391 = vmatpush1.msra.mxu0 0.0
          %392 = vmatprep.subr.mxu0 0.0
          %393 = vmatpush1.msra.mxu0 0.0
          %394 = vmatprep.subr.mxu0 0.0
          %395 = vmatpush1.msra.mxu0 %v351
          %396 = vmatprep.subr.mxu0 0.0
          %397 = vmatpush1.msra.mxu0 %v350
          %398 = vmatprep.subr.mxu0 0.0
          %399 = vmatpush1.msra.mxu0 %v349
          %400 = vmatprep.subr.mxu0 0.0
          %401 = vmatpush1.msra.mxu0 %v348
          %402 = vmatprep.subr.mxu0 0.0
          %403 = vmatpush2.msra.mxu0 0.0
          %404 = vmatprep.subr.mxu0 0.0
          %405 = vmatpush2.msra.mxu0 0.0
          %406 = vmatprep.subr.mxu0 0.0
          %407 = vmatpush2.msra.mxu0 0.0
          %408 = vmatprep.subr.mxu0 0.0
          %409 = vmatpush2.msra.mxu0 0.0
          %410 = vmatprep.subr.mxu0 0.0
          %411 = vmatpush2.msra.mxu0 0.0
          %412 = vmatprep.subr.mxu0 0.0
          %413 = vmatpush2.msra.mxu0 0.0
          %414 = vmatprep.subr.mxu0 0.0
          %415 = vmatpush2.msra.mxu0 0.0
          %416 = vmatprep.subr.mxu0 0.0
          %417 = vmatpush2.msra.mxu0 0.0
          %418 = vmatprep.subr.mxu0 0.0
          %419 = vmatpush2.msra.mxu0 0.0
          %420 = vmatprep.subr.mxu0 0.0
          %421 = vmatpush2.msra.mxu0 0.0
          %422 = vmatprep.subr.mxu0 0.0
          %423 = vmatpush2.msra.mxu0 0.0
          %424 = vmatprep.subr.mxu0 0.0
          %425 = vmatpush2.msra.mxu0 0.0
          %426 = vmatprep.subr.mxu0 0.0
          %427 = vmatpush2.msra.mxu0 0.0
          %428 = vmatprep.subr.mxu0 0.0
          %429 = vmatpush2.msra.mxu0 0.0
          %430 = vmatprep.subr.mxu0 0.0
          %431 = vmatpush2.msra.mxu0 0.0
          %432 = vmatprep.subr.mxu0 0.0
          %433 = vmatpush2.msra.mxu0 0.0
          %434 = vmatprep.mubr.f32.mxu0 0.0
          %435 = vmatmul.mubr.f32.gmra.mxu0 %v359
          %v436 = vpop.f32.mrf.mxu0
          %v437 = vadd.f32 %v356, %v436
          %v438 = vpop.f32.mrf.mxu0
          %439 = vmatprep.mubr.f32.mxu0 0.0
          %440 = vmatmul.mubr.f32.gmra.mxu0 %v362
          %v441 = vpop.f32.mrf.mxu0
          %v442 = vadd.f32 %v356, %v441
          %v443 = vpop.f32.mrf.mxu0
          %444 = vmatprep.mubr.f32.mxu0 0.0
          %445 = vmatmul.mubr.f32.gmra.mxu0 %v365
          %v446 = vpop.f32.mrf.mxu0
          %v447 = vadd.f32 %v356, %v446
          %v448 = vpop.f32.mrf.mxu0
          %449 = vmatprep.mubr.f32.mxu0 0.0
          %450 = vmatmul.mubr.f32.gmra.mxu0 %v368
          %v451 = vpop.f32.mrf.mxu0
          %v452 = vadd.f32 %v356, %v451
          %v453 = vpop.f32.mrf.mxu0
          %454 = vdwg.mxu0
          %v455 = vmax.f32 %v437, 0.0
          %v456 = vmax.f32 %v442, 0.0
          %v457 = vmax.f32 %v447, 0.0
          %v458 = vmax.f32 %v452, 0.0
          %v459 = vld [vmem:[#allocation4 + $0x40] sm:$0xff]
          %v460 = vld [vmem:[#allocation4 + $0x48] sm:$0xff]
          %v461 = vld [vmem:[#allocation4 + $0x50] sm:$0x1]
          %v462 = vlaneseq
          %v463 = vshrl.u32 %v462, 7
          %v464 = vsub.s32 0, %v463
          %v465 = vrot.slane %v461, %v464
          %vm466 = vcmask 130048
          %v468 = vsel %vm466, %v455, 0
          %v471 = vsel %vm466, %v456, 0
          %v474 = vsel %vm466, %v457, 0
          %v477 = vsel %vm466, %v458, 0
          %479 = vmatprep.subr.mxu0 0.0
          %480 = vmatpush1.msra.mxu0 0.0
          %481 = vmatprep.subr.mxu0 0.0
          %482 = vmatpush1.msra.mxu0 0.0
          %483 = vmatprep.subr.mxu0 0.0
          %484 = vmatpush1.msra.mxu0 0.0
          %485 = vmatprep.subr.mxu0 0.0
          %486 = vmatpush1.msra.mxu0 0.0
          %487 = vmatprep.subr.mxu0 0.0
          %488 = vmatpush1.msra.mxu0 0.0
          %489 = vmatprep.subr.mxu0 0.0
          %490 = vmatpush1.msra.mxu0 0.0
          %491 = vmatprep.subr.mxu0 0.0
          %492 = vmatpush1.msra.mxu0 0.0
          %493 = vmatprep.subr.mxu0 0.0
          %494 = vmatpush1.msra.mxu0 0.0
          %495 = vmatprep.subr.mxu0 0.0
          %496 = vmatpush1.msra.mxu0 0.0
          %497 = vmatprep.subr.mxu0 0.0
          %498 = vmatpush1.msra.mxu0 0.0
          %499 = vmatprep.subr.mxu0 0.0
          %500 = vmatpush1.msra.mxu0 0.0
          %501 = vmatprep.subr.mxu0 0.0
          %502 = vmatpush1.msra.mxu0 0.0
          %503 = vmatprep.subr.mxu0 0.0
          %504 = vmatpush1.msra.mxu0 0.0
          %505 = vmatprep.subr.mxu0 0.0
          %506 = vmatpush1.msra.mxu0 0.0
          %507 = vmatprep.subr.mxu0 0.0
          %508 = vmatpush1.msra.mxu0 %v460
          %509 = vmatprep.subr.mxu0 0.0
          %510 = vmatpush1.msra.mxu0 %v459
          %511 = vmatprep.subr.mxu0 0.0
          %512 = vmatpush2.msra.mxu0 0.0
          %513 = vmatprep.subr.mxu0 0.0
          %514 = vmatpush2.msra.mxu0 0.0
          %515 = vmatprep.subr.mxu0 0.0
          %516 = vmatpush2.msra.mxu0 0.0
          %517 = vmatprep.subr.mxu0 0.0
          %518 = vmatpush2.msra.mxu0 0.0
          %519 = vmatprep.subr.mxu0 0.0
          %520 = vmatpush2.msra.mxu0 0.0
          %521 = vmatprep.subr.mxu0 0.0
          %522 = vmatpush2.msra.mxu0 0.0
          %523 = vmatprep.subr.mxu0 0.0
          %524 = vmatpush2.msra.mxu0 0.0
          %525 = vmatprep.subr.mxu0 0.0
          %526 = vmatpush2.msra.mxu0 0.0
          %527 = vmatprep.subr.mxu0 0.0
          %528 = vmatpush2.msra.mxu0 0.0
          %529 = vmatprep.subr.mxu0 0.0
          %530 = vmatpush2.msra.mxu0 0.0
          %531 = vmatprep.subr.mxu0 0.0
          %532 = vmatpush2.msra.mxu0 0.0
          %533 = vmatprep.subr.mxu0 0.0
          %534 = vmatpush2.msra.mxu0 0.0
          %535 = vmatprep.subr.mxu0 0.0
          %536 = vmatpush2.msra.mxu0 0.0
          %537 = vmatprep.subr.mxu0 0.0
          %538 = vmatpush2.msra.mxu0 0.0
          %539 = vmatprep.subr.mxu0 0.0
          %540 = vmatpush2.msra.mxu0 0.0
          %541 = vmatprep.subr.mxu0 0.0
          %542 = vmatpush2.msra.mxu0 0.0
          %543 = vmatprep.mubr.f32.mxu0 0.0
          %544 = vmatmul.mubr.f32.gmra.mxu0 %v468
          %v545 = vpop.f32.mrf.mxu0
          %v546 = vadd.f32 %v465, %v545
          %v547 = vpop.f32.mrf.mxu0
          %548 = vmatprep.mubr.f32.mxu0 0.0
          %549 = vmatmul.mubr.f32.gmra.mxu0 %v471
          %v550 = vpop.f32.mrf.mxu0
          %v551 = vadd.f32 %v465, %v550
          %v552 = vpop.f32.mrf.mxu0
          %553 = vmatprep.mubr.f32.mxu0 0.0
          %554 = vmatmul.mubr.f32.gmra.mxu0 %v474
          %v555 = vpop.f32.mrf.mxu0
          %v556 = vadd.f32 %v465, %v555
          %v557 = vpop.f32.mrf.mxu0
          %558 = vmatprep.mubr.f32.mxu0 0.0
          %559 = vmatmul.mubr.f32.gmra.mxu0 %v477
          %v560 = vpop.f32.mrf.mxu0
          %v561 = vadd.f32 %v465, %v560
          %v562 = vpop.f32.mrf.mxu0
          %563 = vdwg.mxu0
          %v564 = vmax.f32 %v546, 0.0
          %v565 = vmax.f32 %v551, 0.0
          %v566 = vmax.f32 %v556, 0.0
          %v567 = vmax.f32 %v561, 0.0
          %vm568 = vcmask 64512
          %569 = vst.msk [vmem:[#allocation2] sm:$0xff] %vm568, %v564
          %570 = vst.msk [vmem:[#allocation2 + $0x8] sm:$0xff] %vm568, %v565
          %571 = vst.msk [vmem:[#allocation2 + $0x10] sm:$0xff] %vm568, %v566
          %572 = vst.msk [vmem:[#allocation2 + $0x18] sm:$0xff] %vm568, %v567
        $region40: #{tpu_custom_call.1} parent=31 // pred_fallthru
          _
        %p573 = scmp.eq.s32.totalorder %s19, 1
        %p574 = pnand %p573, %p226
        %p575 = pneg %p574
        // Predicated region
        $region41: #{tpu_custom_call.1} parent=31 // pred_check
          _
        $region42: #{tpu_custom_call.1} parent=31 // pred_check_branch
          %577 = sbr.rel (%p574) target = $region44
        $region43: #{tpu_custom_call.1} parent=31 // pred_region
          %v578 = vld [vmem:[#allocation3] sm:$0xff]
          %v579 = vld [vmem:[#allocation3 + $0x8] sm:$0xff]
          %v580 = vld [vmem:[#allocation3 + $0x10] sm:$0xff]
          %v581 = vld [vmem:[#allocation3 + $0x18] sm:$0xff]
          %v582 = vld [vmem:[#allocation4 + $0x58] sm:$0xff]
          %v583 = vld [vmem:[#allocation4 + $0x60] sm:$0x1]
          %v584 = vlaneseq
          %v585 = vshrl.u32 %v584, 7
          %v586 = vsub.s32 0, %v585
          %v587 = vrot.slane %v583, %v586
          %vm588 = vcmask 64512
          %v590 = vsel %vm588, %v578, 0
          %v593 = vsel %vm588, %v579, 0
          %v596 = vsel %vm588, %v580, 0
          %v599 = vsel %vm588, %v581, 0
          %601 = vmatprep.subr.mxu0 0.0
          %602 = vmatpush1.msra.mxu0 0.0
          %603 = vmatprep.subr.mxu0 0.0
          %604 = vmatpush1.msra.mxu0 0.0
          %605 = vmatprep.subr.mxu0 0.0
          %606 = vmatpush1.msra.mxu0 0.0
          %607 = vmatprep.subr.mxu0 0.0
          %608 = vmatpush1.msra.mxu0 0.0
          %609 = vmatprep.subr.mxu0 0.0
          %610 = vmatpush1.msra.mxu0 0.0
          %611 = vmatprep.subr.mxu0 0.0
          %612 = vmatpush1.msra.mxu0 0.0
          %613 = vmatprep.subr.mxu0 0.0
          %614 = vmatpush1.msra.mxu0 0.0
          %615 = vmatprep.subr.mxu0 0.0
          %616 = vmatpush1.msra.mxu0 0.0
          %617 = vmatprep.subr.mxu0 0.0
          %618 = vmatpush1.msra.mxu0 0.0
          %619 = vmatprep.subr.mxu0 0.0
          %620 = vmatpush1.msra.mxu0 0.0
          %621 = vmatprep.subr.mxu0 0.0
          %622 = vmatpush1.msra.mxu0 0.0
          %623 = vmatprep.subr.mxu0 0.0
          %624 = vmatpush1.msra.mxu0 0.0
          %625 = vmatprep.subr.mxu0 0.0
          %626 = vmatpush1.msra.mxu0 0.0
          %627 = vmatprep.subr.mxu0 0.0
          %628 = vmatpush1.msra.mxu0 0.0
          %629 = vmatprep.subr.mxu0 0.0
          %630 = vmatpush1.msra.mxu0 0.0
          %631 = vmatprep.subr.mxu0 0.0
          %632 = vmatpush1.msra.mxu0 %v582
          %633 = vmatprep.subr.mxu0 0.0
          %634 = vmatpush2.msra.mxu0 0.0
          %635 = vmatprep.subr.mxu0 0.0
          %636 = vmatpush2.msra.mxu0 0.0
          %637 = vmatprep.subr.mxu0 0.0
          %638 = vmatpush2.msra.mxu0 0.0
          %639 = vmatprep.subr.mxu0 0.0
          %640 = vmatpush2.msra.mxu0 0.0
          %641 = vmatprep.subr.mxu0 0.0
          %642 = vmatpush2.msra.mxu0 0.0
          %643 = vmatprep.subr.mxu0 0.0
          %644 = vmatpush2.msra.mxu0 0.0
          %645 = vmatprep.subr.mxu0 0.0
          %646 = vmatpush2.msra.mxu0 0.0
          %647 = vmatprep.subr.mxu0 0.0
          %648 = vmatpush2.msra.mxu0 0.0
          %649 = vmatprep.subr.mxu0 0.0
          %650 = vmatpush2.msra.mxu0 0.0
          %651 = vmatprep.subr.mxu0 0.0
          %652 = vmatpush2.msra.mxu0 0.0
          %653 = vmatprep.subr.mxu0 0.0
          %654 = vmatpush2.msra.mxu0 0.0
          %655 = vmatprep.subr.mxu0 0.0
          %656 = vmatpush2.msra.mxu0 0.0
          %657 = vmatprep.subr.mxu0 0.0
          %658 = vmatpush2.msra.mxu0 0.0
          %659 = vmatprep.subr.mxu0 0.0
          %660 = vmatpush2.msra.mxu0 0.0
          %661 = vmatprep.subr.mxu0 0.0
          %662 = vmatpush2.msra.mxu0 0.0
          %663 = vmatprep.subr.mxu0 0.0
          %664 = vmatpush2.msra.mxu0 0.0
          %665 = vmatprep.mubr.f32.mxu0 0.0
          %666 = vmatmul.mubr.f32.gmra.mxu0 %v590
          %v667 = vpop.f32.mrf.mxu0
          %v668 = vadd.f32 %v587, %v667
          %v669 = vpop.f32.mrf.mxu0
          %670 = vmatprep.mubr.f32.mxu0 0.0
          %671 = vmatmul.mubr.f32.gmra.mxu0 %v593
          %v672 = vpop.f32.mrf.mxu0
          %v673 = vadd.f32 %v587, %v672
          %v674 = vpop.f32.mrf.mxu0
          %675 = vmatprep.mubr.f32.mxu0 0.0
          %676 = vmatmul.mubr.f32.gmra.mxu0 %v596
          %v677 = vpop.f32.mrf.mxu0
          %v678 = vadd.f32 %v587, %v677
          %v679 = vpop.f32.mrf.mxu0
          %680 = vmatprep.mubr.f32.mxu0 0.0
          %681 = vmatmul.mubr.f32.gmra.mxu0 %v599
          %v682 = vpop.f32.mrf.mxu0
          %v683 = vadd.f32 %v587, %v682
          %v684 = vpop.f32.mrf.mxu0
          %685 = vdwg.mxu0
          %v686 = vmax.f32 %v668, 0.0
          %v687 = vmax.f32 %v673, 0.0
          %v688 = vmax.f32 %v678, 0.0
          %v689 = vmax.f32 %v683, 0.0
          %v690 = vld [vmem:[#allocation4 + $0x68] sm:$0xff]
          %v691 = vld [vmem:[#allocation4 + $0x70] sm:$0xff]
          %v692 = vld [vmem:[#allocation4 + $0x78] sm:$0xff]
          %v693 = vld [vmem:[#allocation4 + $0x80] sm:$0xff]
          %v694 = vld [vmem:[#allocation4 + $0x88] sm:$0x1]
          %v695 = vlaneseq
          %v696 = vshrl.u32 %v695, 7
          %v697 = vsub.s32 0, %v696
          %v698 = vrot.slane %v694, %v697
          %vm699 = vcmask 261120
          %v701 = vsel %vm699, %v686, 0
          %v704 = vsel %vm699, %v687, 0
          %v707 = vsel %vm699, %v688, 0
          %v710 = vsel %vm699, %v689, 0
          %712 = vmatprep.subr.mxu0 0.0
          %713 = vmatpush1.msra.mxu0 0.0
          %714 = vmatprep.subr.mxu0 0.0
          %715 = vmatpush1.msra.mxu0 0.0
          %716 = vmatprep.subr.mxu0 0.0
          %717 = vmatpush1.msra.mxu0 0.0
          %718 = vmatprep.subr.mxu0 0.0
          %719 = vmatpush1.msra.mxu0 0.0
          %720 = vmatprep.subr.mxu0 0.0
          %721 = vmatpush1.msra.mxu0 0.0
          %722 = vmatprep.subr.mxu0 0.0
          %723 = vmatpush1.msra.mxu0 0.0
          %724 = vmatprep.subr.mxu0 0.0
          %725 = vmatpush1.msra.mxu0 0.0
          %726 = vmatprep.subr.mxu0 0.0
          %727 = vmatpush1.msra.mxu0 0.0
          %728 = vmatprep.subr.mxu0 0.0
          %729 = vmatpush1.msra.mxu0 0.0
          %730 = vmatprep.subr.mxu0 0.0
          %731 = vmatpush1.msra.mxu0 0.0
          %732 = vmatprep.subr.mxu0 0.0
          %733 = vmatpush1.msra.mxu0 0.0
          %734 = vmatprep.subr.mxu0 0.0
          %735 = vmatpush1.msra.mxu0 0.0
          %736 = vmatprep.subr.mxu0 0.0
          %737 = vmatpush1.msra.mxu0 %v693
          %738 = vmatprep.subr.mxu0 0.0
          %739 = vmatpush1.msra.mxu0 %v692
          %740 = vmatprep.subr.mxu0 0.0
          %741 = vmatpush1.msra.mxu0 %v691
          %742 = vmatprep.subr.mxu0 0.0
          %743 = vmatpush1.msra.mxu0 %v690
          %744 = vmatprep.subr.mxu0 0.0
          %745 = vmatpush2.msra.mxu0 0.0
          %746 = vmatprep.subr.mxu0 0.0
          %747 = vmatpush2.msra.mxu0 0.0
          %748 = vmatprep.subr.mxu0 0.0
          %749 = vmatpush2.msra.mxu0 0.0
          %750 = vmatprep.subr.mxu0 0.0
          %751 = vmatpush2.msra.mxu0 0.0
          %752 = vmatprep.subr.mxu0 0.0
          %753 = vmatpush2.msra.mxu0 0.0
          %754 = vmatprep.subr.mxu0 0.0
          %755 = vmatpush2.msra.mxu0 0.0
          %756 = vmatprep.subr.mxu0 0.0
          %757 = vmatpush2.msra.mxu0 0.0
          %758 = vmatprep.subr.mxu0 0.0
          %759 = vmatpush2.msra.mxu0 0.0
          %760 = vmatprep.subr.mxu0 0.0
          %761 = vmatpush2.msra.mxu0 0.0
          %762 = vmatprep.subr.mxu0 0.0
          %763 = vmatpush2.msra.mxu0 0.0
          %764 = vmatprep.subr.mxu0 0.0
          %765 = vmatpush2.msra.mxu0 0.0
          %766 = vmatprep.subr.mxu0 0.0
          %767 = vmatpush2.msra.mxu0 0.0
          %768 = vmatprep.subr.mxu0 0.0
          %769 = vmatpush2.msra.mxu0 0.0
          %770 = vmatprep.subr.mxu0 0.0
          %771 = vmatpush2.msra.mxu0 0.0
          %772 = vmatprep.subr.mxu0 0.0
          %773 = vmatpush2.msra.mxu0 0.0
          %774 = vmatprep.subr.mxu0 0.0
          %775 = vmatpush2.msra.mxu0 0.0
          %776 = vmatprep.mubr.f32.mxu0 0.0
          %777 = vmatmul.mubr.f32.gmra.mxu0 %v701
          %v778 = vpop.f32.mrf.mxu0
          %v779 = vadd.f32 %v698, %v778
          %v780 = vpop.f32.mrf.mxu0
          %781 = vmatprep.mubr.f32.mxu0 0.0
          %782 = vmatmul.mubr.f32.gmra.mxu0 %v704
          %v783 = vpop.f32.mrf.mxu0
          %v784 = vadd.f32 %v698, %v783
          %v785 = vpop.f32.mrf.mxu0
          %786 = vmatprep.mubr.f32.mxu0 0.0
          %787 = vmatmul.mubr.f32.gmra.mxu0 %v707
          %v788 = vpop.f32.mrf.mxu0
          %v789 = vadd.f32 %v698, %v788
          %v790 = vpop.f32.mrf.mxu0
          %791 = vmatprep.mubr.f32.mxu0 0.0
          %792 = vmatmul.mubr.f32.gmra.mxu0 %v710
          %v793 = vpop.f32.mrf.mxu0
          %v794 = vadd.f32 %v698, %v793
          %v795 = vpop.f32.mrf.mxu0
          %796 = vdwg.mxu0
          %v797 = vmax.f32 %v779, 0.0
          %v798 = vmax.f32 %v784, 0.0
          %v799 = vmax.f32 %v789, 0.0
          %v800 = vmax.f32 %v794, 0.0
          %v801 = vld [vmem:[#allocation4 + $0x90] sm:$0xff]
          %v802 = vld [vmem:[#allocation4 + $0x98] sm:$0xff]
          %v803 = vld [vmem:[#allocation4 + $0xa0] sm:$0x1]
          %v804 = vlaneseq
          %v805 = vshrl.u32 %v804, 7
          %v806 = vsub.s32 0, %v805
          %v807 = vrot.slane %v803, %v806
          %vm808 = vcmask 130048
          %v810 = vsel %vm808, %v797, 0
          %v813 = vsel %vm808, %v798, 0
          %v816 = vsel %vm808, %v799, 0
          %v819 = vsel %vm808, %v800, 0
          %821 = vmatprep.subr.mxu0 0.0
          %822 = vmatpush1.msra.mxu0 0.0
          %823 = vmatprep.subr.mxu0 0.0
          %824 = vmatpush1.msra.mxu0 0.0
          %825 = vmatprep.subr.mxu0 0.0
          %826 = vmatpush1.msra.mxu0 0.0
          %827 = vmatprep.subr.mxu0 0.0
          %828 = vmatpush1.msra.mxu0 0.0
          %829 = vmatprep.subr.mxu0 0.0
          %830 = vmatpush1.msra.mxu0 0.0
          %831 = vmatprep.subr.mxu0 0.0
          %832 = vmatpush1.msra.mxu0 0.0
          %833 = vmatprep.subr.mxu0 0.0
          %834 = vmatpush1.msra.mxu0 0.0
          %835 = vmatprep.subr.mxu0 0.0
          %836 = vmatpush1.msra.mxu0 0.0
          %837 = vmatprep.subr.mxu0 0.0
          %838 = vmatpush1.msra.mxu0 0.0
          %839 = vmatprep.subr.mxu0 0.0
          %840 = vmatpush1.msra.mxu0 0.0
          %841 = vmatprep.subr.mxu0 0.0
          %842 = vmatpush1.msra.mxu0 0.0
          %843 = vmatprep.subr.mxu0 0.0
          %844 = vmatpush1.msra.mxu0 0.0
          %845 = vmatprep.subr.mxu0 0.0
          %846 = vmatpush1.msra.mxu0 0.0
          %847 = vmatprep.subr.mxu0 0.0
          %848 = vmatpush1.msra.mxu0 0.0
          %849 = vmatprep.subr.mxu0 0.0
          %850 = vmatpush1.msra.mxu0 %v802
          %851 = vmatprep.subr.mxu0 0.0
          %852 = vmatpush1.msra.mxu0 %v801
          %853 = vmatprep.subr.mxu0 0.0
          %854 = vmatpush2.msra.mxu0 0.0
          %855 = vmatprep.subr.mxu0 0.0
          %856 = vmatpush2.msra.mxu0 0.0
          %857 = vmatprep.subr.mxu0 0.0
          %858 = vmatpush2.msra.mxu0 0.0
          %859 = vmatprep.subr.mxu0 0.0
          %860 = vmatpush2.msra.mxu0 0.0
          %861 = vmatprep.subr.mxu0 0.0
          %862 = vmatpush2.msra.mxu0 0.0
          %863 = vmatprep.subr.mxu0 0.0
          %864 = vmatpush2.msra.mxu0 0.0
          %865 = vmatprep.subr.mxu0 0.0
          %866 = vmatpush2.msra.mxu0 0.0
          %867 = vmatprep.subr.mxu0 0.0
          %868 = vmatpush2.msra.mxu0 0.0
          %869 = vmatprep.subr.mxu0 0.0
          %870 = vmatpush2.msra.mxu0 0.0
          %871 = vmatprep.subr.mxu0 0.0
          %872 = vmatpush2.msra.mxu0 0.0
          %873 = vmatprep.subr.mxu0 0.0
          %874 = vmatpush2.msra.mxu0 0.0
          %875 = vmatprep.subr.mxu0 0.0
          %876 = vmatpush2.msra.mxu0 0.0
          %877 = vmatprep.subr.mxu0 0.0
          %878 = vmatpush2.msra.mxu0 0.0
          %879 = vmatprep.subr.mxu0 0.0
          %880 = vmatpush2.msra.mxu0 0.0
          %881 = vmatprep.subr.mxu0 0.0
          %882 = vmatpush2.msra.mxu0 0.0
          %883 = vmatprep.subr.mxu0 0.0
          %884 = vmatpush2.msra.mxu0 0.0
          %885 = vmatprep.mubr.f32.mxu0 0.0
          %886 = vmatmul.mubr.f32.gmra.mxu0 %v810
          %v887 = vpop.f32.mrf.mxu0
          %v888 = vadd.f32 %v807, %v887
          %v889 = vpop.f32.mrf.mxu0
          %890 = vmatprep.mubr.f32.mxu0 0.0
          %891 = vmatmul.mubr.f32.gmra.mxu0 %v813
          %v892 = vpop.f32.mrf.mxu0
          %v893 = vadd.f32 %v807, %v892
          %v894 = vpop.f32.mrf.mxu0
          %895 = vmatprep.mubr.f32.mxu0 0.0
          %896 = vmatmul.mubr.f32.gmra.mxu0 %v816
          %v897 = vpop.f32.mrf.mxu0
          %v898 = vadd.f32 %v807, %v897
          %v899 = vpop.f32.mrf.mxu0
          %900 = vmatprep.mubr.f32.mxu0 0.0
          %901 = vmatmul.mubr.f32.gmra.mxu0 %v819
          %v902 = vpop.f32.mrf.mxu0
          %v903 = vadd.f32 %v807, %v902
          %v904 = vpop.f32.mrf.mxu0
          %905 = vdwg.mxu0
          %v906 = vmax.f32 %v888, 0.0
          %v907 = vmax.f32 %v893, 0.0
          %v908 = vmax.f32 %v898, 0.0
          %v909 = vmax.f32 %v903, 0.0
          %910 = vst.msk [vmem:[#allocation2] sm:$0xff] %vm588, %v906
          %911 = vst.msk [vmem:[#allocation2 + $0x8] sm:$0xff] %vm588, %v907
          %912 = vst.msk [vmem:[#allocation2 + $0x10] sm:$0xff] %vm588, %v908
          %913 = vst.msk [vmem:[#allocation2 + $0x18] sm:$0xff] %vm588, %v909
        $region44: #{tpu_custom_call.1} parent=31 // pred_fallthru
          _
        %v914 = vld [vmem:[%s213] sm:$0xf]
        %v915 = vld [vmem:[%s213 + $0x4] sm:$0xf]
        %v916 = vld [vmem:[%s213 + $0x8] sm:$0xf]
        %v917 = vld [vmem:[%s213 + $0xc] sm:$0xf]
        %v918 = vunpack.c.l.bf16 %v914
        %v919 = vunpack.c.l.bf16 %v915
        %v920 = vunpack.c.l.bf16 %v916
        %v921 = vunpack.c.l.bf16 %v917
        %v922 = vld [vmem:[#allocation2] sm:$0xff]
        %v923 = vld [vmem:[#allocation2 + $0x8] sm:$0xff]
        %v924 = vld [vmem:[#allocation2 + $0x10] sm:$0xff]
        %v925 = vld [vmem:[#allocation2 + $0x18] sm:$0xff]
        %vm926 = vcmask 261120
        %v928 = vsel %vm926, %v918, 0
        %v931 = vsel %vm926, %v919, 0
        %v934 = vsel %vm926, %v920, 0
        %v937 = vsel %vm926, %v921, 0
        %939 = vmatprep.subr.mxu0 0.0
        %940 = vmatpush1.msra.mxu0 0.0
        %941 = vmatprep.subr.mxu0 0.0
        %942 = vmatpush1.msra.mxu0 0.0
        %943 = vmatprep.subr.mxu0 0.0
        %944 = vmatpush1.msra.mxu0 0.0
        %945 = vmatprep.subr.mxu0 0.0
        %946 = vmatpush1.msra.mxu0 0.0
        %947 = vmatprep.subr.mxu0 0.0
        %948 = vmatpush1.msra.mxu0 0.0
        %949 = vmatprep.subr.mxu0 0.0
        %950 = vmatpush1.msra.mxu0 0.0
        %951 = vmatprep.subr.mxu0 0.0
        %952 = vmatpush1.msra.mxu0 0.0
        %953 = vmatprep.subr.mxu0 0.0
        %954 = vmatpush1.msra.mxu0 0.0
        %955 = vmatprep.subr.mxu0 0.0
        %956 = vmatpush1.msra.mxu0 0.0
        %957 = vmatprep.subr.mxu0 0.0
        %958 = vmatpush1.msra.mxu0 0.0
        %959 = vmatprep.subr.mxu0 0.0
        %960 = vmatpush1.msra.mxu0 0.0
        %961 = vmatprep.subr.mxu0 0.0
        %962 = vmatpush1.msra.mxu0 0.0
        %963 = vmatprep.subr.mxu0 0.0
        %964 = vmatpush1.msra.mxu0 %v925
        %965 = vmatprep.subr.mxu0 0.0
        %966 = vmatpush1.msra.mxu0 %v924
        %967 = vmatprep.subr.mxu0 0.0
        %968 = vmatpush1.msra.mxu0 %v923
        %969 = vmatprep.subr.mxu0 0.0
        %970 = vmatpush1.msra.mxu0 %v922
        %971 = vmatprep.subr.mxu0 0.0
        %972 = vmatpush2.msra.mxu0 0.0
        %973 = vmatprep.subr.mxu0 0.0
        %974 = vmatpush2.msra.mxu0 0.0
        %975 = vmatprep.subr.mxu0 0.0
        %976 = vmatpush2.msra.mxu0 0.0
        %977 = vmatprep.subr.mxu0 0.0
        %978 = vmatpush2.msra.mxu0 0.0
        %979 = vmatprep.subr.mxu0 0.0
        %980 = vmatpush2.msra.mxu0 0.0
        %981 = vmatprep.subr.mxu0 0.0
        %982 = vmatpush2.msra.mxu0 0.0
        %983 = vmatprep.subr.mxu0 0.0
        %984 = vmatpush2.msra.mxu0 0.0
        %985 = vmatprep.subr.mxu0 0.0
        %986 = vmatpush2.msra.mxu0 0.0
        %987 = vmatprep.subr.mxu0 0.0
        %988 = vmatpush2.msra.mxu0 0.0
        %989 = vmatprep.subr.mxu0 0.0
        %990 = vmatpush2.msra.mxu0 0.0
        %991 = vmatprep.subr.mxu0 0.0
        %992 = vmatpush2.msra.mxu0 0.0
        %993 = vmatprep.subr.mxu0 0.0
        %994 = vmatpush2.msra.mxu0 0.0
        %995 = vmatprep.subr.mxu0 0.0
        %996 = vmatpush2.msra.mxu0 0.0
        %997 = vmatprep.subr.mxu0 0.0
        %998 = vmatpush2.msra.mxu0 0.0
        %999 = vmatprep.subr.mxu0 0.0
        %1000 = vmatpush2.msra.mxu0 0.0
        %1001 = vmatprep.subr.mxu0 0.0
        %1002 = vmatpush2.msra.mxu0 0.0
        %1003 = vmatprep.mubr.f32.mxu0 0.0
        %1004 = vmatmul.mubr.f32.gmra.mxu0 %v928
        %v1005 = vpop.f32.mrf.mxu0
        %v1006 = vadd.f32 0.0, %v1005
        %v1007 = vpop.f32.mrf.mxu0
        %1008 = vmatprep.mubr.f32.mxu0 0.0
        %1009 = vmatmul.mubr.f32.gmra.mxu0 %v931
        %v1010 = vpop.f32.mrf.mxu0
        %v1011 = vadd.f32 0.0, %v1010
        %v1012 = vpop.f32.mrf.mxu0
        %1013 = vmatprep.mubr.f32.mxu0 0.0
        %1014 = vmatmul.mubr.f32.gmra.mxu0 %v934
        %v1015 = vpop.f32.mrf.mxu0
        %v1016 = vadd.f32 0.0, %v1015
        %v1017 = vpop.f32.mrf.mxu0
        %1018 = vmatprep.mubr.f32.mxu0 0.0
        %1019 = vmatmul.mubr.f32.gmra.mxu0 %v937
        %v1020 = vpop.f32.mrf.mxu0
        %v1021 = vadd.f32 0.0, %v1020
        %v1022 = vpop.f32.mrf.mxu0
        %1023 = vdwg.mxu0
        %vm1024 = vcmask 64512
        %1025 = vst.msk [vmem:[%s223] sm:$0xff] %vm1024, %v1006
        %1026 = vst.msk [vmem:[%s223 + $0x8] sm:$0xff] %vm1024, %v1011
        %1027 = vst.msk [vmem:[%s223 + $0x10] sm:$0xff] %vm1024, %v1016
        %1028 = vst.msk [vmem:[%s223 + $0x18] sm:$0xff] %vm1024, %v1021
        // Predicated region
        $region45: #{tpu_custom_call.1} parent=31 // pred_check
          %p1029 = pneg %p225
        $region46: #{tpu_custom_call.1} parent=31 // pred_check_branch
          %1031 = sbr.rel (%p1029) target = $region48
        $region47: #{tpu_custom_call.1} parent=31 // pred_region
          %s1032 = smul.u32 %s20, 32
          %s1033 = scalar_lea.vmem [#allocation3], %s1032
          %1034 = vst.msk [vmem:[%s1033] sm:$0xff] %vm1024, %v1006
          %1035 = vst.msk [vmem:[%s1033 + $0x8] sm:$0xff] %vm1024, %v1011
          %1036 = vst.msk [vmem:[%s1033 + $0x10] sm:$0xff] %vm1024, %v1016
          %1037 = vst.msk [vmem:[%s1033 + $0x18] sm:$0xff] %vm1024, %v1021
        $region48: #{tpu_custom_call.1} parent=31 // pred_fallthru
          _
        %s1038 = smul.u32 4, %s20
        %p1039 = scmp.lt.s32.totalorder %s19, 1
        %s1040 = scalar_select %p1039, %s19, 1
        %p1041 = scmp.lt.s32.totalorder %s1038, 3
        %s1042 = scalar_select %p1041, %s1038, 3
        %s1043 = smul.addr %s1040, 4
        %s1044 = sadd.s32 %s1042, %s1043
        %s1045 = smul.addr %s1044, 8
        %s1046 = scalar_lea.vmem %s3, %s1045
        // Predicated region
        $region49: #{tpu_custom_call.1} parent=31 // pred_check
          %p1047 = pneg %p117
        $region50: #{tpu_custom_call.1} parent=31 // pred_check_branch
          %1049 = sbr.rel (%p1047) target = $region52
        $region51: #{tpu_custom_call.1} parent=31 // pred_region
          %s1050 = smul.u32 4, %s20
        $region52: #{tpu_custom_call.1} parent=31 // pred_fallthru
          _
      $region32: #{tpu_custom_call.1} parent=5 // pred_fallthru
        _
      %p1051 = scmp.le.s32.totalorder 2, %s10
      // Predicated region
      $region53: #{tpu_custom_call.1} parent=5 // pred_check
        %p1052 = pneg %p1051
      $region54: #{tpu_custom_call.1} parent=5 // pred_check_branch
        %1054 = sbr.rel (%p1052) target = $region56
      $region55: #{tpu_custom_call.1} parent=5 // pred_region
        %s1055 = ssub.s32 %s10, 2
        // Predicated region
        $region57: #{tpu_custom_call.1} parent=55 // pred_check
          %p1056 = pneg %p123
        $region58: #{tpu_custom_call.1} parent=55 // pred_check_branch
          %1058 = sbr.rel (%p1056) target = $region60
        $region59: #{tpu_custom_call.1} parent=55 // pred_region
          %s1059 = smul.u32 4, %s22
          %p1060 = scmp.lt.s32.totalorder %s21, 1
          %s1061 = scalar_select %p1060, %s21, 1
          %p1062 = scmp.lt.s32.totalorder %s1059, 3
          %s1063 = scalar_select %p1062, %s1059, 3
          %s1064 = smul.addr %s1061, 4
          %s1065 = sadd.s32 %s1063, %s1064
          %s1066 = smul.addr %s1065, 8
          %s1067 = scalar_lea.vmem %s3, %s1066
        $region60: #{tpu_custom_call.1} parent=55 // pred_fallthru
          _
      $region56: #{tpu_custom_call.1} parent=5 // pred_fallthru
        _
    $region6: #{tpu_custom_call.1} parent=1 // loop_footer
      %s14 = sadd.s32 1, %s10
    $region7: #{tpu_custom_call.1} parent=1 // loop_footer_branch
      %9 = sbr.rel target = $region3
    $region8: #{tpu_custom_call.1} parent=1 // loop_exit
      _
    %1068 = vsyncpa [#allocation5], 1
    %s1069 = scalar_lea.sflag [#allocation5], 1
    %1070 = vsyncpa %s1069, 1

</llo_original>
